<compile_context>
chip_gen: v7x
topology: tpu7x:2x2x1
jax: 0.10.0
libtpu: 0.0.40
codegen_flags: <defaults>
</compile_context>

<pallas_src>
import functools

import jax
import jax.numpy as jnp
from jax.experimental import pallas as pl
from jax.experimental.pallas import tpu as pltpu


# ----------------------------------------------------------------------------
# Trace-time helpers: hardware query + tile selection
# ----------------------------------------------------------------------------

def _round_up(a, b):
    return (a + b - 1) // b * b


def _tpu_vmem_capacity():
    try:
        return int(pltpu.get_tpu_info().vmem_capacity_bytes)
    except Exception:
        return 64 * 1024 * 1024   # conservative fallback (v7x per-core VMEM)


def _vmem_limit(est_bytes, cap):
    # Generation-aware scoped-VMEM limit: enough for the estimated footprint,
    # never above ~90% of the physical capacity of this chip.
    return int(min(int(0.9 * cap), max(est_bytes + (8 << 20), 32 << 20)))


def _aligned_divisors_desc(size, align, cap):
    return [d for d in range(min(size, cap), align - 1, -1)
            if d % align == 0 and size % d == 0]


def _divisors_desc(size, cap):
    return [d for d in range(min(size, cap), 0, -1) if size % d == 0]


def _gate_vmem_bytes(bb, tm, tk, h, in_bytes, out_bytes):
    u = bb * tm * h * in_bytes * 2        # double-buffered u tile
    vn = bb * tk * h * in_bytes * 2       # double-buffered (resident) vn strip
    w = tm * tk * in_bytes * 2            # double-buffered weight tile
    o = bb * tm * h * out_bytes * 2       # double-buffered output tile
    acc = bb * tm * h * 4                 # f32 accumulator scratch
    return u + vn + w + o + acc


def _ln_vmem_bytes(tr, h, in_bytes, out_bytes):
    return tr * h * (2 * in_bytes + 2 * out_bytes + 3 * 4)


def _select_gate_tiles(b, n, m, h, itemsize, budget):
    # Output-row tile (M dim of the MXU matmul).  Cap near 256 and near the number
    # of useful rows so n >> seq_len does not force oversized tiles.
    tm_cap = min(256, _round_up(m, 8))
    tm_opts = _aligned_divisors_desc(n, align=8, cap=tm_cap)
    tm = tm_opts[0] if tm_opts else n        # odd n -> single full-dim row tile

    # Reduction rows actually touched (columns of W / rows of vn).
    kp = _round_up(m, 128)
    if kp > n:
        kp = _round_up(m, 8)
    if kp > n:
        kp = m

    def fits(bb_, tm_, tk_):
        return _gate_vmem_bytes(bb_, tm_, tk_, h, itemsize, itemsize) <= budget

    # Prefer a fully resident vn strip (tk == kp): fetched once per batch block,
    # removing the per-row-tile HBM re-streaming of v.  Within that, maximize bb
    # (amortizes W fetches and per-step overhead).  Fall back to 128-aligned
    # reduction tiles only when the resident strip cannot fit, then shrink tm.
    while True:
        tk_opts = [kp] + [t for t in _aligned_divisors_desc(kp, align=128, cap=512)
                          if t != kp]
        for tk in tk_opts:
            for bb in _divisors_desc(b, cap=8):
                if fits(bb, tm, tk):
                    return bb, tm, tk, kp
        nxt = tm // 2
        if tm >= 16 and nxt % 8 == 0 and n % nxt == 0:
            tm = nxt
            continue
        return 1, tm, tk_opts[-1], kp        # last resort (may exceed budget)


def _select_ln_tile(kp, h, itemsize, budget):
    cands = _aligned_divisors_desc(kp, align=8, cap=1024)
    if not cands:
        return kp                            # kp has no multiple-of-8 divisor
    for tr in cands:
        if _ln_vmem_bytes(tr, h, itemsize, itemsize) <= budget:
            return tr
    return cands[-1]


# ----------------------------------------------------------------------------
# Kernel 1: LayerNorm pre-pass over the v half (mem-bound, run once per row)
# ----------------------------------------------------------------------------

def _ln_kernel(v_ref, gamma_ref, beta_ref, vn_ref, *, eps):
    # v_ref / vn_ref: (1, tr, h); gamma_ref / beta_ref: (1, h) f32
    v = v_ref[...].astype(jnp.float32)
    mean = jnp.mean(v, axis=-1, keepdims=True)
    var = jnp.mean(jnp.square(v - mean), axis=-1, keepdims=True)
    vhat = (v - mean) * jax.lax.rsqrt(var + eps)
    vn_ref[...] = (vhat * gamma_ref[...] + beta_ref[...]).astype(vn_ref.dtype)


# ----------------------------------------------------------------------------
# Kernel 2: spatial projection + gating (MXU-bound)
# ----------------------------------------------------------------------------

def _gate_kernel(u_ref, vn_ref, w_ref, o_ref, acc_ref, *, bb):
    # u_ref:   (bb, tm, h)   u-half rows of this output tile
    # vn_ref:  (bb, tk, h)   pre-normalized v rows (resident across mi when tk == Kp)
    # w_ref:   (tm, tk)      spatial-projection weight tile (zero outside [:m, :m])
    # o_ref:   (bb, tm, h)
    # acc_ref: (bb, tm, h)   f32 accumulator scratch
    ki = pl.program_id(2)
    nk = pl.num_programs(2)

    @pl.when(ki == 0)
    def _init():
        acc_ref[...] = jnp.zeros_like(acc_ref)

    w = w_ref[...]

    # TODO(synk): for h == 128 the MXU N dim is half-used on v6e/v7x; folding the
    # batch block into N (vn layout (tk, bb*h)) would double utilization.
    # TODO(synk): for f32 inputs, casting w/vn to bf16 (keeping f32 accumulation)
    # would ~3x MXU throughput if the accuracy budget allows.
    def _mm(bi, carry):
        # out[row, :] += sum_k W[row, k] * vn[k, :]   (MXU, f32 accumulation)
        acc_ref[bi] += jnp.dot(w, vn_ref[bi], preferred_element_type=jnp.float32)
        return carry

    jax.lax.fori_loop(0, bb, _mm, 0, unroll=True)

    @pl.when(ki == nk - 1)
    def _finalize():
        def _gate(bi, carry):
            o_ref[bi] = (u_ref[bi].astype(jnp.float32) * acc_ref[bi]).astype(o_ref.dtype)
            return carry
        jax.lax.fori_loop(0, bb, _gate, 0, unroll=True)


# ----------------------------------------------------------------------------
# Wrapper
# ----------------------------------------------------------------------------

def spatial_gating_unit(x, proj_weight, ln_gamma, ln_beta, *, seq_len,
                        causal=False, eps=1e-5):
    """Pallas implementation of SpatialGatingUnit.forward (mask=None path)."""
    b, n, d = x.shape
    assert d % 2 == 0, "d_ffn must be even"
    h = d // 2
    m = min(n, seq_len)

    itemsize = jnp.dtype(x.dtype).itemsize
    cap = _tpu_vmem_capacity()
    budget = int(0.55 * cap)

    bb, tm, tk, kp = _select_gate_tiles(b, n, m, h, itemsize, budget)
    mp = _round_up(m, tm)                      # <= n by construction (tm | n or tm == n)

    # Give the v7x megacore at least two steps on the parallel grid axes.
    if (b // bb) * (mp // tm) < 2 and bb > 1:
        smaller = _divisors_desc(b, cap=bb - 1)
        bb = smaller[0] if smaller else 1

    nk = kp // tk

    # --------------------------- LayerNorm pre-pass --------------------------
    gamma = ln_gamma.reshape(1, h).astype(jnp.float32)
    beta = ln_beta.reshape(1, h).astype(jnp.float32)
    tr = _select_ln_tile(kp, h, itemsize, budget)

    direct_v = (h % 128 == 0) and (tr % 8 == 0 or tr == n)
    if direct_v:
        v_src, v_blk = x, 1                    # v half read straight out of x
    else:
        # TODO(synk): non-lane-aligned d_ffn//2 (or odd kp) pays one XLA-level slice.
        v_src, v_blk = x[:, :kp, h:], 0

    ln_est = _ln_vmem_bytes(tr, h, itemsize, itemsize)
    vn = pl.pallas_call(
        functools.partial(_ln_kernel, eps=eps),
        out_shape=jax.ShapeDtypeStruct((b, kp, h), x.dtype),
        grid_spec=pltpu.PrefetchScalarGridSpec(
            num_scalar_prefetch=0,
            grid=(b, kp // tr),
            in_specs=[
                pl.BlockSpec((1, tr, h), lambda bi, ri, vb=v_blk: (bi, ri, vb)),
                pl.BlockSpec((1, h), lambda bi, ri: (0, 0)),
                pl.BlockSpec((1, h), lambda bi, ri: (0, 0)),
            ],
            out_specs=pl.BlockSpec((1, tr, h), lambda bi, ri: (bi, ri, 0)),
        ),
        compiler_params=pltpu.CompilerParams(
            dimension_semantics=("parallel", "parallel"),
            vmem_limit_bytes=_vmem_limit(ln_est, cap)),
    )(v_src, gamma, beta)

    # --------------------------- projection weight ---------------------------
    # rows >= m zero -> reproduces F.pad of the projected v for rows [m, mp)
    # cols >= m zero -> reproduces the v[:, :m] slice (reduction only over m cols)
    w = proj_weight[:m, :m].astype(x.dtype)
    if causal:
        keep = jnp.tril(jnp.ones((m, m), dtype=bool))
        w = jnp.where(keep, w, jnp.zeros((), dtype=x.dtype))
    if (mp, kp) == (m, m):
        w_eff = w
    else:
        w_eff = jnp.zeros((mp, kp), dtype=x.dtype).at[:m, :m].set(w)

    # ------------------------------ gating kernel ----------------------------
    direct_u = (h % 128 == 0) and (tm % 8 == 0 or tm == n)
    if direct_u:
        u_src, u_blk = x, 0                    # u half read straight out of x
    else:
        u_src, u_blk = x[:, :mp, :h], 0

    gate_est = _gate_vmem_bytes(bb, tm, tk, h, itemsize, itemsize)
    grid = (b // bb, mp // tm, nk)

    out = pl.pallas_call(
        functools.partial(_gate_kernel, bb=bb),
        out_shape=jax.ShapeDtypeStruct((b, mp, h), x.dtype),
        grid_spec=pltpu.PrefetchScalarGridSpec(
            num_scalar_prefetch=0,
            grid=grid,
            in_specs=[
                # u rows of this output tile (constant across the reduction axis)
                pl.BlockSpec((bb, tm, h), lambda bi, mi, ki, ub=u_blk: (bi, mi, ub)),
                # pre-normalized v strip; with tk == kp the index map is constant
                # across (mi, ki) so it is DMA'd only once per batch block
                pl.BlockSpec((bb, tk, h), lambda bi, mi, ki: (bi, ki, 0)),
                # weight tile (shared across the batch block)
                pl.BlockSpec((tm, tk), lambda bi, mi, ki: (mi, ki)),
            ],
            out_specs=pl.BlockSpec((bb, tm, h), lambda bi, mi, ki: (bi, mi, 0)),
            scratch_shapes=[pltpu.VMEM((bb, tm, h), jnp.float32)],
        ),
        compiler_params=pltpu.CompilerParams(
            dimension_semantics=("parallel", "parallel", "arbitrary"),
            vmem_limit_bytes=_vmem_limit(gate_est, cap)),
    )(u_src, vn, w_eff)

    if mp < n:
        # Rows >= m of the reference output are u * 0 == 0; append them cheaply
        # instead of running all-zero grid steps.
        out = jnp.concatenate(
            [out, jnp.zeros((b, n - mp, h), dtype=out.dtype)], axis=1)
    return out


# ----------------------------------------------------------------------------
# Pure-JAX reference (transcription of the PyTorch forward) for verification
# ----------------------------------------------------------------------------

def _reference(x, proj_weight, gamma, beta, seq_len, causal=False, eps=1e-5):
    b, n, d = x.shape
    h = d // 2
    m = min(n, seq_len)
    u, v = x[..., :h], x[..., h:]
    mean = v.mean(-1, keepdims=True)
    var = ((v - mean) ** 2).mean(-1, keepdims=True)
    vn = (v - mean) / jnp.sqrt(var + eps) * gamma + beta
    w = proj_weight[:m, :m]
    if causal:
        w = jnp.where(jnp.tril(jnp.ones((m, m), dtype=bool)), w, 0.0)
    vp = jnp.einsum('bnd,mn->bmd', vn[:, :m], w)
    vp = jnp.pad(vp, ((0, 0), (0, n - m), (0, 0)))
    return u * vp


if __name__ == "__main__":
    key = jax.random.PRNGKey(0)
    k1, k2, k3, k4, k5 = jax.random.split(key, 5)

    # Case 1: seq_len == n (typical gMLP shape, kept small).
    b, seq_len, d_ffn = 2, 8, 256
    n = seq_len
    x = jax.random.normal(k1, (b, n, d_ffn), dtype=jnp.float32)
    proj_w = 0.1 * jax.random.normal(k2, (seq_len, seq_len), dtype=jnp.float32)
    ln_gamma = 1.0 + 0.1 * jax.random.normal(k3, (d_ffn // 2,), dtype=jnp.float32)
    ln_beta = 0.1 * jax.random.normal(k4, (d_ffn // 2,), dtype=jnp.float32)

    out = spatial_gating_unit(x, proj_w, ln_gamma, ln_beta,
                              seq_len=seq_len, causal=False)
    out = jax.block_until_ready(out)
    ref = _reference(x, proj_w, ln_gamma, ln_beta, seq_len, causal=False)
    assert out.shape == (b, n, d_ffn // 2)
    assert jnp.allclose(out, ref, atol=2e-5, rtol=2e-5), "case 1 mismatch"

    # Case 2: n > seq_len with causal masking (exercises the padded output rows).
    n2 = 16
    x2 = jax.random.normal(k5, (b, n2, d_ffn), dtype=jnp.float32)
    out2 = spatial_gating_unit(x2, proj_w, ln_gamma, ln_beta,
                               seq_len=seq_len, causal=True)
    out2 = jax.block_until_ready(out2)
    ref2 = _reference(x2, proj_w, ln_gamma, ln_beta, seq_len, causal=True)
    assert out2.shape == (b, n2, d_ffn // 2)
    assert jnp.allclose(out2, ref2, atol=2e-5, rtol=2e-5), "case 2 mismatch"

    print("KERNEL_OK")
</pallas_src>

<mosaic_0001>
module attributes {stable_mosaic.version = 11 : i64} {
  func.func @_ln_kernel(%arg0: i32, %arg1: i32, %arg2: memref<1x8x128xf32, #tpu.memory_space<vmem>>, %arg3: memref<1x128xf32, #tpu.memory_space<vmem>>, %arg4: memref<1x128xf32, #tpu.memory_space<vmem>>, %arg5: memref<1x8x128xf32, #tpu.memory_space<vmem>>) attributes {dimension_semantics = [#tpu.dimension_semantics<parallel>, #tpu.dimension_semantics<parallel>], iteration_bounds = array<i64: 2, 1>, scalar_prefetch = 0 : i64, scratch_operands = 0 : i64, tpu.core_type = #tpu.core_type<tc>, window_params = [{transform_indices = @transform_0, window_bounds = array<i64: 1, 8, 128>}, {pipeline_mode = #tpu.pipeline_mode<synchronous>, transform_indices = @transform_1, window_bounds = array<i64: 1, 128>}, {pipeline_mode = #tpu.pipeline_mode<synchronous>, transform_indices = @transform_2, window_bounds = array<i64: 1, 128>}, {transform_indices = @transform_3, window_bounds = array<i64: 1, 8, 128>}]} {
    %c0 = arith.constant 0 : index
    %c0_0 = arith.constant 0 : index
    %c0_1 = arith.constant 0 : index
    %0 = vector.load %arg2[%c0, %c0_0, %c0_1] : memref<1x8x128xf32, #tpu.memory_space<vmem>>, vector<1x8x128xf32>
    %cst = arith.constant dense<0.000000e+00> : vector<1x8xf32>
    %1 = vector.multi_reduction <add>, %0, %cst [2] : vector<1x8x128xf32> to vector<1x8xf32>
    %2 = vector.shape_cast %1 : vector<1x8xf32> to vector<1x8x1xf32>
    %cst_2 = arith.constant 1.280000e+02 : f32
    %3 = vector.broadcast %cst_2 : f32 to vector<1x8x1xf32>
    %4 = arith.divf %2, %3 : vector<1x8x1xf32>
    %5 = vector.broadcast %4 : vector<1x8x1xf32> to vector<1x8x128xf32>
    %6 = arith.subf %0, %5 : vector<1x8x128xf32>
    %7 = arith.mulf %6, %6 : vector<1x8x128xf32>
    %cst_3 = arith.constant dense<0.000000e+00> : vector<1x8xf32>
    %8 = vector.multi_reduction <add>, %7, %cst_3 [2] : vector<1x8x128xf32> to vector<1x8xf32>
    %9 = vector.shape_cast %8 : vector<1x8xf32> to vector<1x8x1xf32>
    %cst_4 = arith.constant 1.280000e+02 : f32
    %10 = vector.broadcast %cst_4 : f32 to vector<1x8x1xf32>
    %11 = arith.divf %9, %10 : vector<1x8x1xf32>
    %12 = vector.broadcast %4 : vector<1x8x1xf32> to vector<1x8x128xf32>
    %13 = arith.subf %0, %12 : vector<1x8x128xf32>
    %cst_5 = arith.constant 9.99999974E-6 : f32
    %14 = vector.broadcast %cst_5 : f32 to vector<1x8x1xf32>
    %15 = arith.addf %11, %14 : vector<1x8x1xf32>
    %16 = math.rsqrt %15 : vector<1x8x1xf32>
    %17 = vector.broadcast %16 : vector<1x8x1xf32> to vector<1x8x128xf32>
    %18 = arith.mulf %13, %17 : vector<1x8x128xf32>
    %c0_6 = arith.constant 0 : index
    %c0_7 = arith.constant 0 : index
    %19 = vector.load %arg3[%c0_6, %c0_7] : memref<1x128xf32, #tpu.memory_space<vmem>>, vector<1x128xf32>
    %20 = vector.shape_cast %19 : vector<1x128xf32> to vector<1x1x128xf32>
    %21 = vector.broadcast %20 : vector<1x1x128xf32> to vector<1x8x128xf32>
    %22 = arith.mulf %18, %21 : vector<1x8x128xf32>
    %c0_8 = arith.constant 0 : index
    %c0_9 = arith.constant 0 : index
    %23 = vector.load %arg4[%c0_8, %c0_9] : memref<1x128xf32, #tpu.memory_space<vmem>>, vector<1x128xf32>
    %24 = vector.shape_cast %23 : vector<1x128xf32> to vector<1x1x128xf32>
    %25 = vector.broadcast %24 : vector<1x1x128xf32> to vector<1x8x128xf32>
    %26 = arith.addf %22, %25 : vector<1x8x128xf32>
    %c0_10 = arith.constant 0 : index
    %c0_11 = arith.constant 0 : index
    %c0_12 = arith.constant 0 : index
    %27 = vector.load %arg5[%c0_10, %c0_11, %c0_12] : memref<1x8x128xf32, #tpu.memory_space<vmem>>, vector<1x8x128xf32>
    tpu.vector_store %arg5[%c0_10, %c0_11, %c0_12], %26 {strides = array<i32>} : memref<1x8x128xf32, #tpu.memory_space<vmem>>, vector<1x8x128xf32>,
    return
  }
  func.func @transform_0(%arg0: i32, %arg1: i32) -> (i32, i32, i32) {
    %c1_i32 = arith.constant 1 : i32
    %c0_i32 = arith.constant 0 : i32
    return %arg0, %arg1, %c1_i32 : i32, i32, i32
  }
  func.func @transform_1(%arg0: i32, %arg1: i32) -> (i32, i32) {
    %c0_i32 = arith.constant 0 : i32
    %c0_i32_0 = arith.constant 0 : i32
    %c0_i32_1 = arith.constant 0 : i32
    return %c0_i32, %c0_i32_0 : i32, i32
  }
  func.func @transform_2(%arg0: i32, %arg1: i32) -> (i32, i32) {
    %c0_i32 = arith.constant 0 : i32
    %c0_i32_0 = arith.constant 0 : i32
    %c0_i32_1 = arith.constant 0 : i32
    return %c0_i32, %c0_i32_0 : i32, i32
  }
  func.func @transform_3(%arg0: i32, %arg1: i32) -> (i32, i32, i32) {
    %c0_i32 = arith.constant 0 : i32
    %c0_i32_0 = arith.constant 0 : i32
    return %arg0, %arg1, %c0_i32 : i32, i32, i32
  }
}

</mosaic_0001>

<llo_original>
// kernel: tpu_custom_call.1
$region0: #{tpu_custom_call.1}
  #allocation0 [shape = 'u32[]', space=smem, size = 0x4, offset = 0x4, fixed_abs, tag = 'smem constant byte address 0x4 - core index']
  #allocation1 [shape = 'u32[144,128]{1,0:T(1,128)}', space=vmem, size = 0x12000, scoped, tag = 'internal scratch']
  %s0 = inlined_call_operand.hbm [shape: f32[2,8,256], index: 0, kind: input, shape index: {}]
  %s1 = inlined_call_operand.vmem [shape: f32[1,128], index: 1, kind: input, shape index: {}]
  %s2 = inlined_call_operand.vmem [shape: f32[1,128], index: 2, kind: input, shape index: {}]
  %s3 = inlined_call_operand.hbm [shape: f32[2,8,128], index: 3, kind: output, shape index: {}]
  %s4 = sld [smem:[#allocation0]]
  $region49: #{tpu_custom_call.1} parent=0
    _
  %s6 = ssub.s32 1, %s4
  %s7 = scalar_select 0, %s6, %s4
  $region1: #{tpu_custom_call.1} parent=0
    #allocation2 [shape = 'u8[8192]{0}', space=vmem, size = 0x2000, scoped, tag = 'input window, operand 0']
    #allocation3 [shape = 's32[2]{0}', space=sflag, size = 0x8, scoped, tag = 'scoped memory for tpu_custom_call.1']
    #allocation4 [shape = 's32[2]{0}', space=sflag, size = 0x8, scoped, tag = 'scoped memory for tpu_custom_call.1']
    #allocation5 [shape = 'u8[8192]{0}', space=vmem, size = 0x2000, scoped, tag = 'output window, operand 0']
    %8 = vsyncpa [#allocation3], 0
    %s9 = scalar_lea.sflag [#allocation3], 1
    %10 = vsyncpa %s9, 0
    %11 = vsyncpa [#allocation4], 0
    %s12 = scalar_lea.sflag [#allocation4], 1
    %13 = vsyncpa %s12, 0
    loop: start=0, step=1, limit=4
    $region2: #{tpu_custom_call.1} parent=1 // loop_pre_header
      _
    $region3: #{tpu_custom_call.1} parent=1 // loop_header
      %s15 = sphi 0, %s19
      %p16 = scmp.ge.s32.totalorder %s15, 4
      %s22 = sphi 0, %s34
      %s23 = sphi 0, %s30
      %s24 = sphi 0, %s22
      %s25 = sphi 0, %s23
      %s26 = sphi 0, %s24
      %s27 = sphi 0, %s25
      %s39 = sphi 0, %s41
      %s42 = sphi 0, %s39
      %s43 = sphi 0, %s42
      %s59 = sphi 0, %s43
      %s63 = sphi 0, %s63
      %s65 = sphi 0, %s63
      %s66 = sphi 0, %s65
      %s80 = sphi 0, %s66
      %s84 = sphi 0, %s84
      %s86 = sphi 0, %s84
      %s87 = sphi 0, %s86
      %s101 = sphi 0, %s87
      %s109 = sphi 0, %s111
      %s112 = sphi 0, %s109
      %s113 = sphi 0, %s112
      %s129 = sphi 0, %s113
    $region4: #{tpu_custom_call.1} parent=1 // loop_header_branch
      %18 = sbr.rel (%p16) target = $region8
    $region5: #{tpu_custom_call.1} parent=1 // loop_body
      %s20 = ssub.s32 %s15, 1
      %s21 = ssub.s32 %s15, 2
      %s28 = sadd.s32 1, %s23
      %p29 = scmp.ge.s32.totalorder %s28, 1
      %s30 = scalar_select %p29, 0, %s28
      %s31 = sadd.s32 1, %s22
      %s32 = scalar_select %p29, %s31, %s22
      %p33 = scmp.ge.s32.totalorder %s32, 2
      %s34 = scalar_select %p33, 0, %s32
      %s35 = ssub.s32 %s22, %s34
      %s36 = ssub.s32 %s23, %s30
      %s37 = sor.u32 %s35, %s36
      %p38 = scmp.eq.s32.totalorder %s37, 0
      %s40 = sadd.s32 %s39, 1
      %s41 = scalar_select %p38, %s39, %s40
      %p44 = pneg %p38
      %p45 = scmp.eq.s32.totalorder %s15, 1
      %p46 = por %p44, %p45
      %p47 = scmp.ne.s32.totalorder %s39, %s42
      %p48 = scmp.eq.s32.totalorder %s15, 0
      %p49 = por %p47, %p48
      %p50 = scmp.ne.s32.totalorder %s39, %s42
      %p51 = scmp.eq.s32.totalorder %s20, 1
      %p52 = por %p50, %p51
      %p53 = scmp.ne.s32.totalorder %s42, %s43
      %p54 = scmp.eq.s32.totalorder %s20, 0
      %p55 = por %p53, %p54
      %p56 = scmp.ne.s32.totalorder %s42, %s43
      %p57 = scmp.eq.s32.totalorder %s21, 1
      %p58 = por %p56, %p57
      %p60 = scmp.ne.s32.totalorder %s43, %s59
      %p61 = scmp.eq.s32.totalorder %s21, 0
      %p62 = por %p60, %p61
      %s64 = sadd.s32 %s63, 1
      %p67 = scmp.eq.s32.totalorder %s15, 1
      %p68 = scmp.ne.s32.totalorder %s63, %s65
      %p69 = scmp.eq.s32.totalorder %s15, 0
      %p70 = por %p68, %p69
      %p71 = scmp.ne.s32.totalorder %s63, %s65
      %p72 = scmp.eq.s32.totalorder %s20, 1
      %p73 = por %p71, %p72
      %p74 = scmp.ne.s32.totalorder %s65, %s66
      %p75 = scmp.eq.s32.totalorder %s20, 0
      %p76 = por %p74, %p75
      %p77 = scmp.ne.s32.totalorder %s65, %s66
      %p78 = scmp.eq.s32.totalorder %s21, 1
      %p79 = por %p77, %p78
      %p81 = scmp.ne.s32.totalorder %s66, %s80
      %p82 = scmp.eq.s32.totalorder %s21, 0
      %p83 = por %p81, %p82
      %s85 = sadd.s32 %s84, 1
      %p88 = scmp.eq.s32.totalorder %s15, 1
      %p89 = scmp.ne.s32.totalorder %s84, %s86
      %p90 = scmp.eq.s32.totalorder %s15, 0
      %p91 = por %p89, %p90
      %p92 = scmp.ne.s32.totalorder %s84, %s86
      %p93 = scmp.eq.s32.totalorder %s20, 1
      %p94 = por %p92, %p93
      %p95 = scmp.ne.s32.totalorder %s86, %s87
      %p96 = scmp.eq.s32.totalorder %s20, 0
      %p97 = por %p95, %p96
      %p98 = scmp.ne.s32.totalorder %s86, %s87
      %p99 = scmp.eq.s32.totalorder %s21, 1
      %p100 = por %p98, %p99
      %p102 = scmp.ne.s32.totalorder %s87, %s101
      %p103 = scmp.eq.s32.totalorder %s21, 0
      %p104 = por %p102, %p103
      %s105 = ssub.s32 %s22, %s34
      %s106 = ssub.s32 %s23, %s30
      %s107 = sor.u32 %s105, %s106
      %p108 = scmp.eq.s32.totalorder %s107, 0
      %s110 = sadd.s32 %s109, 1
      %s111 = scalar_select %p108, %s109, %s110
      %p114 = pneg %p108
      %p115 = scmp.eq.s32.totalorder %s15, 1
      %p116 = por %p114, %p115
      %p117 = scmp.ne.s32.totalorder %s109, %s112
      %p118 = scmp.eq.s32.totalorder %s15, 0
      %p119 = por %p117, %p118
      %p120 = scmp.ne.s32.totalorder %s109, %s112
      %p121 = scmp.eq.s32.totalorder %s20, 1
      %p122 = por %p120, %p121
      %p123 = scmp.ne.s32.totalorder %s112, %s113
      %p124 = scmp.eq.s32.totalorder %s20, 0
      %p125 = por %p123, %p124
      %p126 = scmp.ne.s32.totalorder %s112, %s113
      %p127 = scmp.eq.s32.totalorder %s21, 1
      %p128 = por %p126, %p127
      %p130 = scmp.ne.s32.totalorder %s113, %s129
      %p131 = scmp.eq.s32.totalorder %s21, 0
      %p132 = por %p130, %p131
      %p133 = scmp.le.s32.totalorder 1, %s15
      %p134 = scmp.lt.s32.totalorder %s15, 3
      %p135 = pnand %p133, %p134
      %p136 = pneg %p135
      // Predicated region
      $region9: #{tpu_custom_call.1} parent=5 // pred_check
        _
      $region10: #{tpu_custom_call.1} parent=5 // pred_check_branch
        %138 = sbr.rel (%p135) target = $region12
      $region11: #{tpu_custom_call.1} parent=5 // pred_region
        %s139 = ssub.s32 %s15, 1
        // Predicated region
        $region13: #{tpu_custom_call.1} parent=11 // pred_check
          %p140 = pneg %p76
        $region14: #{tpu_custom_call.1} parent=11 // pred_check_branch
          %142 = sbr.rel (%p140) target = $region16
        $region15: #{tpu_custom_call.1} parent=11 // pred_region
          _
        $region16: #{tpu_custom_call.1} parent=11 // pred_fallthru
          _
        // Predicated region
        $region17: #{tpu_custom_call.1} parent=11 // pred_check
          %p143 = pneg %p97
        $region18: #{tpu_custom_call.1} parent=11 // pred_check_branch
          %145 = sbr.rel (%p143) target = $region20
        $region19: #{tpu_custom_call.1} parent=11 // pred_region
          _
        $region20: #{tpu_custom_call.1} parent=11 // pred_fallthru
          _
      $region12: #{tpu_custom_call.1} parent=5 // pred_fallthru
        _
      %p146 = scmp.lt.s32.totalorder %s15, 2
      // Predicated region
      $region21: #{tpu_custom_call.1} parent=5 // pred_check
        %p147 = pneg %p146
      $region22: #{tpu_custom_call.1} parent=5 // pred_check_branch
        %149 = sbr.rel (%p147) target = $region24
      $region23: #{tpu_custom_call.1} parent=5 // pred_region
        // Predicated region
        $region25: #{tpu_custom_call.1} parent=23 // pred_check
          %p150 = pneg %p49
        $region26: #{tpu_custom_call.1} parent=23 // pred_check_branch
          %152 = sbr.rel (%p150) target = $region28
        $region27: #{tpu_custom_call.1} parent=23 // pred_region
          %s153 = sand.u32 %s39, 1
          %s154 = scalar_lea.sflag [#allocation3], %s153
          %s155 = sand.u32 %s39, 1
          %s156 = smul.addr %s155, 8
          %s157 = scalar_lea.vmem [#allocation2], %s156
          %s159 = ssub.s32 128, 128
          %160 = vsyncadd %s154, %s159
          %s161 = smul.addr %s23, 2
          %s162 = sadd.s32 1, %s161
          %s163 = smul.addr %s22, 2
          %s164 = sadd.s32 %s162, %s163
          %s165 = smul.addr %s164, 128
          %s166 = scalar_lea.hbm %s0, %s165
          %s168 = sshll.u32 %s157, 4
          %s169 = int_to_ptr.vmem [resolvable:$true] %s168
          %171 = dma.hbm_to_vmem [thread:$0]  %s166, 128, %s169, %s154
        $region28: #{tpu_custom_call.1} parent=23 // pred_fallthru
          _
      $region24: #{tpu_custom_call.1} parent=5 // pred_fallthru
        _
      %p172 = scmp.le.s32.totalorder 1, %s15
      %p173 = scmp.lt.s32.totalorder %s15, 3
      %p174 = pnand %p172, %p173
      %p175 = pneg %p174
      // Predicated region
      $region29: #{tpu_custom_call.1} parent=5 // pred_check
        _
      $region30: #{tpu_custom_call.1} parent=5 // pred_check_branch
        %177 = sbr.rel (%p174) target = $region32
      $region31: #{tpu_custom_call.1} parent=5 // pred_region
        %s178 = ssub.s32 %s15, 1
        %s179 = sand.u32 %s42, 1
        %s180 = scalar_lea.sflag [#allocation3], %s179
        %s181 = sand.u32 %s42, 1
        %s182 = smul.addr %s181, 8
        %s183 = scalar_lea.vmem [#allocation2], %s182
        // Predicated region
        $region33: #{tpu_custom_call.1} parent=31 // pred_check
          %p184 = pneg %p55
        $region34: #{tpu_custom_call.1} parent=31 // pred_check_branch
          %186 = sbr.rel (%p184) target = $region36
        $region35: #{tpu_custom_call.1} parent=31 // pred_region
          %187 = dma.done %s180, 128
        $region36: #{tpu_custom_call.1} parent=31 // pred_fallthru
          _
        %s188 = sand.u32 %s42, 1
        %s189 = scalar_lea.sflag [#allocation3], %s188
        %s190 = sand.u32 %s42, 1
        %s191 = smul.addr %s190, 8
        %s192 = scalar_lea.vmem [#allocation2], %s191
        %p193 = pneg %p55
        %p194 = pneg %p52
        %p195 = pneg %p76
        %p196 = pneg %p73
        %p197 = pneg %p97
        %p198 = pneg %p94
        %p199 = pneg %p125
        %p200 = pneg %p122
        %s201 = sand.u32 %s112, 1
        %s202 = scalar_lea.sflag [#allocation4], %s201
        %s203 = sand.u32 %s112, 1
        %s204 = smul.addr %s203, 8
        %s205 = scalar_lea.vmem [#allocation5], %s204
        %v206 = vld [vmem:[%s183] sm:$0xff]
        %207 = vadd.xlane.f32.xlu0 %v206
        %v208 = vpop.xlane.xlu0 %207
        %v209 = vrcp.pop 128.0
        %v210 = vmul.f32 %v208, %v209
        %v211 = vsub.f32 %v206, %v210
        %v212 = vmul.f32 %v211, %v211
        %213 = vadd.xlane.f32.xlu0 %v212
        %v214 = vpop.xlane.xlu0 %213
        %v215 = vmul.f32 %v214, %v209
        %v216 = vadd.f32 %v215, 1e-05
        %v217 = vrsqrt.pop %v216
        %v218 = vmul.f32 %v211, %v217
        %v219 = vld [vmem:[%s1] sm:$0x1]
        %v221 = vlaneseq
        %v222 = vshrl.u32 %v221, 7
        %v223 = vsub.s32 0, %v222
        %v224 = vrot.slane %v219, %v223
        %v226 = vmul.f32 %v218, %v224
        %v227 = vld [vmem:[%s2] sm:$0x1]
        %v229 = vlaneseq
        %v230 = vshrl.u32 %v229, 7
        %v231 = vsub.s32 0, %v230
        %v232 = vrot.slane %v227, %v231
        %v234 = vadd.f32 %v226, %v232
        %235 = vst [vmem:[%s205] sm:$0xff] %v234
        %s236 = sand.u32 %s112, 1
        %s237 = scalar_lea.sflag [#allocation4], %s236
        %s238 = sand.u32 %s112, 1
        %s239 = smul.addr %s238, 8
        %s240 = scalar_lea.vmem [#allocation5], %s239
        // Predicated region
        $region37: #{tpu_custom_call.1} parent=31 // pred_check
          %p241 = pneg %p122
        $region38: #{tpu_custom_call.1} parent=31 // pred_check_branch
          %243 = sbr.rel (%p241) target = $region40
        $region39: #{tpu_custom_call.1} parent=31 // pred_region
          %s245 = ssub.s32 128, 128
          %246 = vsyncadd %s237, %s245
          %s247 = sadd.s32 %s25, %s24
          %s248 = smul.addr %s247, 128
          %s249 = scalar_lea.hbm %s3, %s248
          %s251 = sshll.u32 %s240, 4
          %s252 = int_to_ptr.vmem [resolvable:$true] %s251
          %254 = dma.vmem_to_hbm [thread:$0]  %s252, 128, %s249, %s237
        $region40: #{tpu_custom_call.1} parent=31 // pred_fallthru
          _
      $region32: #{tpu_custom_call.1} parent=5 // pred_fallthru
        _
      %p255 = scmp.le.s32.totalorder 2, %s15
      // Predicated region
      $region41: #{tpu_custom_call.1} parent=5 // pred_check
        %p256 = pneg %p255
      $region42: #{tpu_custom_call.1} parent=5 // pred_check_branch
        %258 = sbr.rel (%p256) target = $region44
      $region43: #{tpu_custom_call.1} parent=5 // pred_region
        %s259 = ssub.s32 %s15, 2
        // Predicated region
        $region45: #{tpu_custom_call.1} parent=43 // pred_check
          %p260 = pneg %p128
        $region46: #{tpu_custom_call.1} parent=43 // pred_check_branch
          %262 = sbr.rel (%p260) target = $region48
        $region47: #{tpu_custom_call.1} parent=43 // pred_region
          %s263 = sand.u32 %s113, 1
          %s264 = scalar_lea.sflag [#allocation4], %s263
          %s265 = sand.u32 %s113, 1
          %s266 = smul.addr %s265, 8
          %s267 = scalar_lea.vmem [#allocation5], %s266
          %268 = dma.done %s264, 128
        $region48: #{tpu_custom_call.1} parent=43 // pred_fallthru
          _
      $region44: #{tpu_custom_call.1} parent=5 // pred_fallthru
        _
    $region6: #{tpu_custom_call.1} parent=1 // loop_footer
      %s19 = sadd.s32 1, %s15
    $region7: #{tpu_custom_call.1} parent=1 // loop_footer_branch
      %14 = sbr.rel target = $region3
    $region8: #{tpu_custom_call.1} parent=1 // loop_exit
      _
    %269 = vsyncpa [#allocation3], 1
    %s270 = scalar_lea.sflag [#allocation3], 1
    %271 = vsyncpa %s270, 1
    %272 = vsyncpa [#allocation4], 1
    %s273 = scalar_lea.sflag [#allocation4], 1
    %274 = vsyncpa %s273, 1

</llo_original>
